<compile_context>
chip_gen: v7x
topology: tpu7x:2x2x1
jax: 0.10.0
libtpu: 0.0.40
codegen_flags: <defaults>
</compile_context>

<pallas_src>
import functools

import jax
import jax.numpy as jnp
from jax.experimental import pallas as pl
from jax.experimental.pallas import tpu as pltpu

_SUBLANE = 8


def _round_up(n, m):
    return ((n + m - 1) // m) * m


def _choose_batch_tile(B, batch_tile):
    """Pick the per-step batch tile (static, multiple of 8 sublanes)."""
    bt = max(int(batch_tile), _SUBLANE)
    # v7x megacore: dimension_semantics=("parallel",) only shards across the
    # two TensorCores if there are >=2 grid steps, so cap the tile at about
    # half the batch (rounded to 512) when the batch is big enough to split.
    if B > 2 * _SUBLANE:
        bt = min(bt, max(_round_up(-(-B // 2), 512), 512))
    # Never larger than the (sublane-rounded) batch itself.
    bt = min(bt, _round_up(B, _SUBLANE))
    return _round_up(bt, _SUBLANE)


def _mlp_kernel(x_ref, w1_ref, b1_ref, w2_ref, b2_ref, w3_ref, b3_ref, o_ref):
    # In-kernel cast of the streamed x to the matmul compute dtype (bf16 by
    # default).  This is a VPU pack that hides under the MXU-bound schedule
    # and avoids a separate wrapper-side HBM pass over x.
    x = x_ref[...].astype(w1_ref.dtype)

    # fc1 -> relu  (MXU matmul, f32 accumulation; bias/ReLU in f32 on the VPU)
    h1 = jnp.dot(x, w1_ref[...], preferred_element_type=jnp.float32)
    h1 = jnp.maximum(h1 + b1_ref[...], 0.0)
    # dropout (inference) -> identity

    # fc2 -> relu  (cast activations to the weight dtype so the bf16 path
    # actually hits the native-bf16 MXU)
    h2 = jnp.dot(h1.astype(w2_ref.dtype), w2_ref[...],
                 preferred_element_type=jnp.float32)
    h2 = jnp.maximum(h2 + b2_ref[...], 0.0)
    # dropout (inference) -> identity

    # fc3 (single output column): VPU multiply + XLU lane reduction instead of
    # a 1-column MXU matmul.  w3_ref is a (1, 64) row, b3_ref is (1, 1).
    y = jnp.sum(h2 * w3_ref[...], axis=-1, keepdims=True) + b3_ref[...]

    # Exact sigmoid: exp on the EUP, true divide (not approx reciprocal).
    o_ref[...] = 1.0 / (1.0 + jnp.exp(-y))


@functools.partial(jax.jit, static_argnames=("batch_tile", "compute_dtype"))
def surrogate_physics_forward(x, params, *, batch_tile=4096,
                              compute_dtype=jnp.bfloat16):
    """x: (B, input_dim).  Returns (B, 1) float32 (sigmoid outputs)."""
    x = x.astype(jnp.float32)  # matches `x = x.float()` (no-op if already f32)
    B, D = x.shape
    w1, b1, w2, b2, w3, b3 = params
    H1 = w1.shape[1]  # 128
    H2 = w2.shape[1]  # 64

    bt = _choose_batch_tile(B, batch_tile)
    grid = (pl.cdiv(B, bt),)  # partial trailing block: masked output store

    # Matmul weights in the compute dtype (bf16 by default; tiny, ~50 KB).
    w1c = jnp.asarray(w1, compute_dtype)
    w2c = jnp.asarray(w2, compute_dtype)
    # Elementwise path stays f32 (v5e has no bf16 VPU/EUP).
    b1r = jnp.asarray(b1, jnp.float32).reshape(1, H1)
    b2r = jnp.asarray(b2, jnp.float32).reshape(1, H2)
    w3r = jnp.asarray(w3, jnp.float32).reshape(1, H2)   # fc3 runs on the VPU
    b3r = jnp.asarray(b3, jnp.float32).reshape(1, 1)

    out = pl.pallas_call(
        _mlp_kernel,
        out_shape=jax.ShapeDtypeStruct((B, 1), jnp.float32),
        grid_spec=pltpu.PrefetchScalarGridSpec(
            num_scalar_prefetch=0,
            grid=grid,
            in_specs=[
                # x: tiled along batch (the only per-step DMA that scales with B)
                pl.BlockSpec((bt, D), lambda i: (i, 0)),
                # weights / biases: full blocks, VMEM-resident for every step
                pl.BlockSpec((D, H1), lambda i: (0, 0)),
                pl.BlockSpec((1, H1), lambda i: (0, 0)),
                pl.BlockSpec((H1, H2), lambda i: (0, 0)),
                pl.BlockSpec((1, H2), lambda i: (0, 0)),
                pl.BlockSpec((1, H2), lambda i: (0, 0)),
                pl.BlockSpec((1, 1), lambda i: (0, 0)),
            ],
            out_specs=pl.BlockSpec((bt, 1), lambda i: (i, 0)),
        ),
        compiler_params=pltpu.CompilerParams(
            dimension_semantics=("parallel",),  # shards across TCs on v7x
        ),
    )(x, w1c, b1r, w2c, b2r, w3r, b3r)

    return out


def init_params(key, input_dim):
    """Deterministic synthetic init (PyTorch-style uniform fan-in scaling)."""
    def linear(k, fan_in, fan_out):
        k_w, k_b = jax.random.split(k)
        bound = 1.0 / jnp.sqrt(fan_in)
        # stored as (in, out) so the kernel does x @ W
        w = jax.random.uniform(k_w, (fan_in, fan_out), jnp.float32, -bound, bound)
        b = jax.random.uniform(k_b, (1, fan_out), jnp.float32, -bound, bound)
        return w, b

    k1, k2, k3 = jax.random.split(key, 3)
    w1, b1 = linear(k1, input_dim, 128)
    w2, b2 = linear(k2, 128, 64)
    w3, b3 = linear(k3, 64, 1)
    return (w1, b1, w2, b2, w3, b3)


if __name__ == "__main__":
    key = jax.random.PRNGKey(0)
    k_param, k_x1, k_x2, k_x3 = jax.random.split(key, 4)

    input_dim = 32
    params = init_params(k_param, input_dim)

    def reference(x):
        w1, b1, w2, b2, w3, b3 = params
        h1 = jnp.maximum(x @ w1 + b1, 0.0)
        h2 = jnp.maximum(h1 @ w2 + b2, 0.0)
        return jax.nn.sigmoid(h2 @ w3 + b3)

    # 1) Small batch, f32 matmul path (tight check against the f32 reference).
    x_small = jax.random.normal(k_x1, (8, input_dim), dtype=jnp.float32)
    out_small = jax.block_until_ready(
        surrogate_physics_forward(x_small, params, compute_dtype=jnp.float32))
    assert out_small.shape == (8, 1)
    assert jnp.allclose(out_small, reference(x_small), atol=2e-3, rtol=2e-3)

    # 2) Ragged batch, default bf16 matmul path, single tile with masked tail.
    x_rag = jax.random.normal(k_x2, (300, input_dim), dtype=jnp.float32)
    out_rag = jax.block_until_ready(surrogate_physics_forward(x_rag, params))
    assert out_rag.shape == (300, 1)
    assert jnp.allclose(out_rag, reference(x_rag), atol=2e-2, rtol=2e-2)

    # 3) Larger batch: >=2 grid steps (both TCs on v7x) + partial last block.
    x_big = jax.random.normal(k_x3, (1200, input_dim), dtype=jnp.float32)
    out_big = jax.block_until_ready(surrogate_physics_forward(x_big, params))
    assert out_big.shape == (1200, 1)
    assert jnp.allclose(out_big, reference(x_big), atol=2e-2, rtol=2e-2)

    print("KERNEL_OK")
</pallas_src>

<mosaic_0001>
module attributes {stable_mosaic.version = 11 : i64} {
  func.func @_mlp_kernel(%arg0: i32, %arg1: memref<8x32xf32, #tpu.memory_space<vmem>>, %arg2: memref<32x128xf32, #tpu.memory_space<vmem>>, %arg3: memref<1x128xf32, #tpu.memory_space<vmem>>, %arg4: memref<128x64xf32, #tpu.memory_space<vmem>>, %arg5: memref<1x64xf32, #tpu.memory_space<vmem>>, %arg6: memref<1x64xf32, #tpu.memory_space<vmem>>, %arg7: memref<1x1xf32, #tpu.memory_space<vmem>>, %arg8: memref<8x1xf32, #tpu.memory_space<vmem>>) attributes {dimension_semantics = [#tpu.dimension_semantics<parallel>], iteration_bounds = array<i64: 1>, scalar_prefetch = 0 : i64, scratch_operands = 0 : i64, tpu.core_type = #tpu.core_type<tc>, window_params = [{transform_indices = @transform_0, window_bounds = array<i64: 8, 32>}, {pipeline_mode = #tpu.pipeline_mode<synchronous>, transform_indices = @transform_1, window_bounds = array<i64: 32, 128>}, {pipeline_mode = #tpu.pipeline_mode<synchronous>, transform_indices = @transform_2, window_bounds = array<i64: 1, 128>}, {pipeline_mode = #tpu.pipeline_mode<synchronous>, transform_indices = @transform_3, window_bounds = array<i64: 128, 64>}, {pipeline_mode = #tpu.pipeline_mode<synchronous>, transform_indices = @transform_4, window_bounds = array<i64: 1, 64>}, {pipeline_mode = #tpu.pipeline_mode<synchronous>, transform_indices = @transform_5, window_bounds = array<i64: 1, 64>}, {pipeline_mode = #tpu.pipeline_mode<synchronous>, transform_indices = @transform_6, window_bounds = array<i64: 1, 1>}, {transform_indices = @transform_7, window_bounds = array<i64: 8, 1>}]} {
    %c0 = arith.constant 0 : index
    %c0_0 = arith.constant 0 : index
    %0 = vector.load %arg1[%c0, %c0_0] : memref<8x32xf32, #tpu.memory_space<vmem>>, vector<8x32xf32>
    %c0_1 = arith.constant 0 : index
    %c0_2 = arith.constant 0 : index
    %1 = vector.load %arg2[%c0_1, %c0_2] : memref<32x128xf32, #tpu.memory_space<vmem>>, vector<32x128xf32>
    %cst = arith.constant dense<0.000000e+00> : vector<8x128xf32>
    %2 = tpu.matmul %0, %1, %cst {dimension_numbers = #tpu.dot_dimension_numbers<[1], [0], [0], [1], [0, 0, 1, 1], [], []>} : vector<8x32xf32>, vector<32x128xf32>, vector<8x128xf32> -> vector<8x128xf32>
    %c0_3 = arith.constant 0 : index
    %c0_4 = arith.constant 0 : index
    %3 = vector.load %arg3[%c0_3, %c0_4] : memref<1x128xf32, #tpu.memory_space<vmem>>, vector<1x128xf32>
    %4 = vector.broadcast %3 : vector<1x128xf32> to vector<8x128xf32>
    %5 = arith.addf %2, %4 : vector<8x128xf32>
    %cst_5 = arith.constant 0.000000e+00 : f32
    %6 = vector.broadcast %cst_5 : f32 to vector<8x128xf32>
    %7 = arith.maximumf %5, %6 : vector<8x128xf32>
    %c0_6 = arith.constant 0 : index
    %c0_7 = arith.constant 0 : index
    %8 = vector.load %arg4[%c0_6, %c0_7] : memref<128x64xf32, #tpu.memory_space<vmem>>, vector<128x64xf32>
    %cst_8 = arith.constant dense<0.000000e+00> : vector<8x64xf32>
    %9 = tpu.matmul %7, %8, %cst_8 {dimension_numbers = #tpu.dot_dimension_numbers<[1], [0], [0], [1], [0, 0, 1, 1], [], []>} : vector<8x128xf32>, vector<128x64xf32>, vector<8x64xf32> -> vector<8x64xf32>
    %c0_9 = arith.constant 0 : index
    %c0_10 = arith.constant 0 : index
    %10 = vector.load %arg5[%c0_9, %c0_10] : memref<1x64xf32, #tpu.memory_space<vmem>>, vector<1x64xf32>
    %11 = vector.broadcast %10 : vector<1x64xf32> to vector<8x64xf32>
    %12 = arith.addf %9, %11 : vector<8x64xf32>
    %cst_11 = arith.constant 0.000000e+00 : f32
    %13 = vector.broadcast %cst_11 : f32 to vector<8x64xf32>
    %14 = arith.maximumf %12, %13 : vector<8x64xf32>
    %c0_12 = arith.constant 0 : index
    %c0_13 = arith.constant 0 : index
    %15 = vector.load %arg6[%c0_12, %c0_13] : memref<1x64xf32, #tpu.memory_space<vmem>>, vector<1x64xf32>
    %16 = vector.broadcast %15 : vector<1x64xf32> to vector<8x64xf32>
    %17 = arith.mulf %14, %16 : vector<8x64xf32>
    %cst_14 = arith.constant dense<0.000000e+00> : vector<8xf32>
    %18 = vector.multi_reduction <add>, %17, %cst_14 [1] : vector<8x64xf32> to vector<8xf32>
    %19 = vector.shape_cast %18 : vector<8xf32> to vector<8x1xf32>
    %c0_15 = arith.constant 0 : index
    %c0_16 = arith.constant 0 : index
    %20 = vector.load %arg7[%c0_15, %c0_16] : memref<1x1xf32, #tpu.memory_space<vmem>>, vector<1x1xf32>
    %21 = vector.broadcast %20 : vector<1x1xf32> to vector<8x1xf32>
    %22 = arith.addf %19, %21 : vector<8x1xf32>
    %cst_17 = arith.constant 0.000000e+00 : f32
    %23 = vector.broadcast %cst_17 : f32 to vector<8x1xf32>
    %24 = arith.subf %23, %22 : vector<8x1xf32>
    %25 = math.exp %24 : vector<8x1xf32>
    %cst_18 = arith.constant 1.000000e+00 : f32
    %26 = vector.broadcast %cst_18 : f32 to vector<8x1xf32>
    %27 = arith.addf %26, %25 : vector<8x1xf32>
    %cst_19 = arith.constant 1.000000e+00 : f32
    %28 = vector.broadcast %cst_19 : f32 to vector<8x1xf32>
    %29 = arith.divf %28, %27 : vector<8x1xf32>
    %c0_20 = arith.constant 0 : index
    %c0_21 = arith.constant 0 : index
    %30 = vector.load %arg8[%c0_20, %c0_21] : memref<8x1xf32, #tpu.memory_space<vmem>>, vector<8x1xf32>
    tpu.vector_store %arg8[%c0_20, %c0_21], %29 {strides = array<i32>} : memref<8x1xf32, #tpu.memory_space<vmem>>, vector<8x1xf32>,
    return
  }
  func.func @transform_0(%arg0: i32) -> (i32, i32) {
    %c0_i32 = arith.constant 0 : i32
    %c0_i32_0 = arith.constant 0 : i32
    return %arg0, %c0_i32 : i32, i32
  }
  func.func @transform_1(%arg0: i32) -> (i32, i32) {
    %c0_i32 = arith.constant 0 : i32
    %c0_i32_0 = arith.constant 0 : i32
    %c0_i32_1 = arith.constant 0 : i32
    return %c0_i32, %c0_i32_0 : i32, i32
  }
  func.func @transform_2(%arg0: i32) -> (i32, i32) {
    %c0_i32 = arith.constant 0 : i32
    %c0_i32_0 = arith.constant 0 : i32
    %c0_i32_1 = arith.constant 0 : i32
    return %c0_i32, %c0_i32_0 : i32, i32
  }
  func.func @transform_3(%arg0: i32) -> (i32, i32) {
    %c0_i32 = arith.constant 0 : i32
    %c0_i32_0 = arith.constant 0 : i32
    %c0_i32_1 = arith.constant 0 : i32
    return %c0_i32, %c0_i32_0 : i32, i32
  }
  func.func @transform_4(%arg0: i32) -> (i32, i32) {
    %c0_i32 = arith.constant 0 : i32
    %c0_i32_0 = arith.constant 0 : i32
    %c0_i32_1 = arith.constant 0 : i32
    return %c0_i32, %c0_i32_0 : i32, i32
  }
  func.func @transform_5(%arg0: i32) -> (i32, i32) {
    %c0_i32 = arith.constant 0 : i32
    %c0_i32_0 = arith.constant 0 : i32
    %c0_i32_1 = arith.constant 0 : i32
    return %c0_i32, %c0_i32_0 : i32, i32
  }
  func.func @transform_6(%arg0: i32) -> (i32, i32) {
    %c0_i32 = arith.constant 0 : i32
    %c0_i32_0 = arith.constant 0 : i32
    %c0_i32_1 = arith.constant 0 : i32
    return %c0_i32, %c0_i32_0 : i32, i32
  }
  func.func @transform_7(%arg0: i32) -> (i32, i32) {
    %c0_i32 = arith.constant 0 : i32
    %c0_i32_0 = arith.constant 0 : i32
    return %arg0, %c0_i32 : i32, i32
  }
}

</mosaic_0001>

<llo_original>
// kernel: surrogate_physics_forward.1
$region0: #{surrogate_physics_forward.1}
  #allocation0 [shape = 'u32[]', space=smem, size = 0x4, offset = 0x4, fixed_abs, tag = 'smem constant byte address 0x4 - core index']
  #allocation1 [shape = 'u32[144,128]{1,0:T(1,128)}', space=vmem, size = 0x12000, scoped, tag = 'internal scratch']
  #allocation2 [shape = 'f32[1,1]{1,0:T(1,128)S(1)}', space=vmem, size = 0x200, scoped, tag = 'scoped memory for surrogate_physics_forward.1']
  %s0 = inlined_call_operand.vmem [shape: f32[8,32], index: 0, kind: input, shape index: {}]
  %s1 = inlined_call_operand.vmem [shape: f32[32,128], index: 1, kind: input, shape index: {}]
  %s2 = inlined_call_operand.vmem [shape: f32[1,128], index: 2, kind: input, shape index: {}]
  %s3 = inlined_call_operand.vmem [shape: f32[128,64], index: 3, kind: input, shape index: {}]
  %s4 = inlined_call_operand.vmem [shape: f32[1,64], index: 4, kind: input, shape index: {}]
  %s5 = inlined_call_operand.vmem [shape: f32[1,64], index: 5, kind: input, shape index: {}]
  %s6 = inlined_call_operand.<no memory space> [shape: f32[1,1], index: 6, kind: input, shape index: {}]
  %s7 = inlined_call_operand.vmem [shape: f32[8,1], index: 7, kind: output, shape index: {}]
  %s8 = sld [smem:[#allocation0]]
  $region38: #{surrogate_physics_forward.1} parent=0
    _
  %s10 = ssub.s32 1, %s8
  %s11 = scalar_select 0, %s10, %s8
  %v12 = vstv %s6
  %13 = vst [vmem:[#allocation2] sm:$0x1] %v12
  // Predicated region
  $region2: #{surrogate_physics_forward.1} parent=0 // pred_check
    _
  $region3: #{surrogate_physics_forward.1} parent=0 // pred_check_branch
    %15 = sbr.rel (0) target = $region5
  $region4: #{surrogate_physics_forward.1} parent=0 // pred_region
    _
  $region5: #{surrogate_physics_forward.1} parent=0 // pred_fallthru
    _
  // Predicated region
  $region6: #{surrogate_physics_forward.1} parent=0 // pred_check
    _
  $region7: #{surrogate_physics_forward.1} parent=0 // pred_check_branch
    %17 = sbr.rel (0) target = $region9
  $region8: #{surrogate_physics_forward.1} parent=0 // pred_region
    _
  $region9: #{surrogate_physics_forward.1} parent=0 // pred_fallthru
    _
  // Predicated region
  $region10: #{surrogate_physics_forward.1} parent=0 // pred_check
    _
  $region11: #{surrogate_physics_forward.1} parent=0 // pred_check_branch
    %19 = sbr.rel (0) target = $region13
  $region12: #{surrogate_physics_forward.1} parent=0 // pred_region
    _
  $region13: #{surrogate_physics_forward.1} parent=0 // pred_fallthru
    _
  // Predicated region
  $region14: #{surrogate_physics_forward.1} parent=0 // pred_check
    _
  $region15: #{surrogate_physics_forward.1} parent=0 // pred_check_branch
    %21 = sbr.rel (0) target = $region17
  $region16: #{surrogate_physics_forward.1} parent=0 // pred_region
    _
  $region17: #{surrogate_physics_forward.1} parent=0 // pred_fallthru
    _
  // Predicated region
  $region18: #{surrogate_physics_forward.1} parent=0 // pred_check
    _
  $region19: #{surrogate_physics_forward.1} parent=0 // pred_check_branch
    %23 = sbr.rel (0) target = $region21
  $region20: #{surrogate_physics_forward.1} parent=0 // pred_region
    _
  $region21: #{surrogate_physics_forward.1} parent=0 // pred_fallthru
    _
  // Predicated region
  $region22: #{surrogate_physics_forward.1} parent=0 // pred_check
    _
  $region23: #{surrogate_physics_forward.1} parent=0 // pred_check_branch
    %25 = sbr.rel (0) target = $region25
  $region24: #{surrogate_physics_forward.1} parent=0 // pred_region
    _
  $region25: #{surrogate_physics_forward.1} parent=0 // pred_fallthru
    _
  // Predicated region
  $region26: #{surrogate_physics_forward.1} parent=0 // pred_check
    _
  $region27: #{surrogate_physics_forward.1} parent=0 // pred_check_branch
    %27 = sbr.rel (0) target = $region29
  $region28: #{surrogate_physics_forward.1} parent=0 // pred_region
    _
  $region29: #{surrogate_physics_forward.1} parent=0 // pred_fallthru
    _
  %v28 = vld [vmem:[%s0] sm:$0xff]
  %v29 = vld [vmem:[%s1] sm:$0xff]
  %v30 = vld [vmem:[%s1 + $0x8] sm:$0xff]
  %v31 = vld [vmem:[%s1 + $0x10] sm:$0xff]
  %v32 = vld [vmem:[%s1 + $0x18] sm:$0xff]
  %v33 = vld [vmem:[%s2] sm:$0x1]
  %v35 = vlaneseq
  %v36 = vshrl.u32 %v35, 7
  %v37 = vsub.s32 0, %v36
  %v38 = vrot.slane %v33, %v37
  %vm40 = vcmask 261120
  %v42 = vsel %vm40, %v28, 0
  %44 = vmatprep.subr.mxu0 0.0
  %45 = vmatpush1.msra.mxu0 %v29
  %46 = vmatprep.subr.mxu0 0.0
  %47 = vmatpush1.msra.mxu0 %v30
  %48 = vmatprep.subr.mxu0 0.0
  %49 = vmatpush1.msra.mxu0 %v31
  %50 = vmatprep.subr.mxu0 0.0
  %51 = vmatpush1.msra.mxu0 %v32
  %52 = vmatprep.subr.mxu0 0.0
  %53 = vmatpush1.msra.mxu0 0.0
  %54 = vmatprep.subr.mxu0 0.0
  %55 = vmatpush1.msra.mxu0 0.0
  %56 = vmatprep.subr.mxu0 0.0
  %57 = vmatpush1.msra.mxu0 0.0
  %58 = vmatprep.subr.mxu0 0.0
  %59 = vmatpush1.msra.mxu0 0.0
  %60 = vmatprep.subr.mxu0 0.0
  %61 = vmatpush1.msra.mxu0 0.0
  %62 = vmatprep.subr.mxu0 0.0
  %63 = vmatpush1.msra.mxu0 0.0
  %64 = vmatprep.subr.mxu0 0.0
  %65 = vmatpush1.msra.mxu0 0.0
  %66 = vmatprep.subr.mxu0 0.0
  %67 = vmatpush1.msra.mxu0 0.0
  %68 = vmatprep.subr.mxu0 0.0
  %69 = vmatpush1.msra.mxu0 0.0
  %70 = vmatprep.subr.mxu0 0.0
  %71 = vmatpush1.msra.mxu0 0.0
  %72 = vmatprep.subr.mxu0 0.0
  %73 = vmatpush1.msra.mxu0 0.0
  %74 = vmatprep.subr.mxu0 0.0
  %75 = vmatpush1.msra.mxu0 0.0
  %76 = vmatprep.subr.mxu0 0.0
  %77 = vmatpush1.msra.mxu0 0.0
  %78 = vmatprep.subr.mxu0 0.0
  %79 = vmatpush1.msra.mxu0 0.0
  %80 = vmatprep.subr.mxu0 0.0
  %81 = vmatpush1.msra.mxu0 0.0
  %82 = vmatprep.subr.mxu0 0.0
  %83 = vmatpush1.msra.mxu0 0.0
  %84 = vmatprep.subr.mxu0 0.0
  %85 = vmatpush1.msra.mxu0 0.0
  %86 = vmatprep.subr.mxu0 0.0
  %87 = vmatpush1.msra.mxu0 0.0
  %88 = vmatprep.subr.mxu0 0.0
  %89 = vmatpush1.msra.mxu0 0.0
  %90 = vmatprep.subr.mxu0 0.0
  %91 = vmatpush1.msra.mxu0 0.0
  %92 = vmatprep.subr.mxu0 0.0
  %93 = vmatpush1.msra.mxu0 0.0
  %94 = vmatprep.subr.mxu0 0.0
  %95 = vmatpush1.msra.mxu0 0.0
  %96 = vmatprep.subr.mxu0 0.0
  %97 = vmatpush1.msra.mxu0 0.0
  %98 = vmatprep.subr.mxu0 0.0
  %99 = vmatpush1.msra.mxu0 0.0
  %100 = vmatprep.subr.mxu0 0.0
  %101 = vmatpush1.msra.mxu0 0.0
  %102 = vmatprep.subr.mxu0 0.0
  %103 = vmatpush1.msra.mxu0 0.0
  %104 = vmatprep.subr.mxu0 0.0
  %105 = vmatpush1.msra.mxu0 0.0
  %106 = vmatprep.subr.mxu0 0.0
  %107 = vmatpush1.msra.mxu0 0.0
  %108 = vmatprep.mubr.f32.mxu0 0.0
  %109 = vmatmul.mubr.f32.gmra.mrb[0].mxu0 %v42
  %v110 = vpop.f32.mrb[0].mxu0
  %v111 = vadd.f32 %v38, %v110
  %v112 = vpop.f32.mrb[0].mxu0
  %113 = vdwg.mxu0
  %v114 = vmax.f32 %v111, 0.0
  %v115 = vld [vmem:[%s3] sm:$0xff]
  %v116 = vld [vmem:[%s3 + $0x8] sm:$0xff]
  %v117 = vld [vmem:[%s3 + $0x10] sm:$0xff]
  %v118 = vld [vmem:[%s3 + $0x18] sm:$0xff]
  %v119 = vld [vmem:[%s3 + $0x20] sm:$0xff]
  %v120 = vld [vmem:[%s3 + $0x28] sm:$0xff]
  %v121 = vld [vmem:[%s3 + $0x30] sm:$0xff]
  %v122 = vld [vmem:[%s3 + $0x38] sm:$0xff]
  %v123 = vld [vmem:[%s3 + $0x40] sm:$0xff]
  %v124 = vld [vmem:[%s3 + $0x48] sm:$0xff]
  %v125 = vld [vmem:[%s3 + $0x50] sm:$0xff]
  %v126 = vld [vmem:[%s3 + $0x58] sm:$0xff]
  %v127 = vld [vmem:[%s3 + $0x60] sm:$0xff]
  %v128 = vld [vmem:[%s3 + $0x68] sm:$0xff]
  %v129 = vld [vmem:[%s3 + $0x70] sm:$0xff]
  %v130 = vld [vmem:[%s3 + $0x78] sm:$0xff]
  %v131 = vld [vmem:[%s4] sm:$0x1]
  %v133 = vlaneseq
  %v134 = vshrl.u32 %v133, 7
  %v135 = vsub.s32 0, %v134
  %v136 = vrot.slane %v131, %v135
  %138 = vmatprep.subr.mxu0 0.0
  %139 = vmatpush1.msra.mxu0 %v115
  %140 = vmatprep.subr.mxu0 0.0
  %141 = vmatpush1.msra.mxu0 %v116
  %142 = vmatprep.subr.mxu0 0.0
  %143 = vmatpush1.msra.mxu0 %v117
  %144 = vmatprep.subr.mxu0 0.0
  %145 = vmatpush1.msra.mxu0 %v118
  %146 = vmatprep.subr.mxu0 0.0
  %147 = vmatpush1.msra.mxu0 %v119
  %148 = vmatprep.subr.mxu0 0.0
  %149 = vmatpush1.msra.mxu0 %v120
  %150 = vmatprep.subr.mxu0 0.0
  %151 = vmatpush1.msra.mxu0 %v121
  %152 = vmatprep.subr.mxu0 0.0
  %153 = vmatpush1.msra.mxu0 %v122
  %154 = vmatprep.subr.mxu0 0.0
  %155 = vmatpush1.msra.mxu0 %v123
  %156 = vmatprep.subr.mxu0 0.0
  %157 = vmatpush1.msra.mxu0 %v124
  %158 = vmatprep.subr.mxu0 0.0
  %159 = vmatpush1.msra.mxu0 %v125
  %160 = vmatprep.subr.mxu0 0.0
  %161 = vmatpush1.msra.mxu0 %v126
  %162 = vmatprep.subr.mxu0 0.0
  %163 = vmatpush1.msra.mxu0 %v127
  %164 = vmatprep.subr.mxu0 0.0
  %165 = vmatpush1.msra.mxu0 %v128
  %166 = vmatprep.subr.mxu0 0.0
  %167 = vmatpush1.msra.mxu0 %v129
  %168 = vmatprep.subr.mxu0 0.0
  %169 = vmatpush1.msra.mxu0 %v130
  %170 = vmatprep.subr.mxu0 0.0
  %171 = vmatpush1.msra.mxu0 0.0
  %172 = vmatprep.subr.mxu0 0.0
  %173 = vmatpush1.msra.mxu0 0.0
  %174 = vmatprep.subr.mxu0 0.0
  %175 = vmatpush1.msra.mxu0 0.0
  %176 = vmatprep.subr.mxu0 0.0
  %177 = vmatpush1.msra.mxu0 0.0
  %178 = vmatprep.subr.mxu0 0.0
  %179 = vmatpush1.msra.mxu0 0.0
  %180 = vmatprep.subr.mxu0 0.0
  %181 = vmatpush1.msra.mxu0 0.0
  %182 = vmatprep.subr.mxu0 0.0
  %183 = vmatpush1.msra.mxu0 0.0
  %184 = vmatprep.subr.mxu0 0.0
  %185 = vmatpush1.msra.mxu0 0.0
  %186 = vmatprep.subr.mxu0 0.0
  %187 = vmatpush1.msra.mxu0 0.0
  %188 = vmatprep.subr.mxu0 0.0
  %189 = vmatpush1.msra.mxu0 0.0
  %190 = vmatprep.subr.mxu0 0.0
  %191 = vmatpush1.msra.mxu0 0.0
  %192 = vmatprep.subr.mxu0 0.0
  %193 = vmatpush1.msra.mxu0 0.0
  %194 = vmatprep.subr.mxu0 0.0
  %195 = vmatpush1.msra.mxu0 0.0
  %196 = vmatprep.subr.mxu0 0.0
  %197 = vmatpush1.msra.mxu0 0.0
  %198 = vmatprep.subr.mxu0 0.0
  %199 = vmatpush1.msra.mxu0 0.0
  %200 = vmatprep.subr.mxu0 0.0
  %201 = vmatpush1.msra.mxu0 0.0
  %202 = vmatprep.mubr.f32.mxu0 0.0
  %203 = vmatmul.mubr.f32.gmra.mrb[0].mxu0 %v114
  %v204 = vpop.f32.mrb[0].mxu0
  %v205 = vadd.f32 %v136, %v204
  %v206 = vpop.f32.mrb[0].mxu0
  %207 = vdwg.mxu0
  %v208 = vmax.f32 %v205, 0.0
  %v209 = vld [vmem:[%s5] sm:$0x1]
  %v211 = vlaneseq
  %v212 = vshrl.u32 %v211, 7
  %v213 = vsub.s32 0, %v212
  %v214 = vrot.slane %v209, %v213
  %v216 = vmul.f32 %v208, %v214
  %vm217 = vcmask 523264
  %v218 = vsel %vm217, %v216, 0.0
  %219 = vadd.xlane.f32.xlu0 %v218
  %v220 = vpop.xlane.xlu0 %219
  %v221 = vld [vmem:[#allocation2] sm:$0x1]
  %v223 = vlaneseq
  %v224 = vshrl.u32 %v223, 7
  %v225 = vsub.s32 0, %v224
  %v226 = vrot.slane %v221, %v225
  %v228 = vadd.f32 %v220, %v226
  %v229 = vsub.f32 0.0, %v228
  %v230 = vmul.f32 %v229, 1.442695
  %v231 = vpow.pop %v230
  %v232 = vadd.f32 %v231, 1.0
  %v233 = vrcp.pop %v232
  %v234 = vmul.f32 1.0, %v233
  %vm235 = vcmask 7168
  %236 = vst.msk [vmem:[%s7] sm:$0xff] %vm235, %v234
  // Predicated region
  $region30: #{surrogate_physics_forward.1} parent=0 // pred_check
    _
  $region31: #{surrogate_physics_forward.1} parent=0 // pred_check_branch
    %238 = sbr.rel (0) target = $region33
  $region32: #{surrogate_physics_forward.1} parent=0 // pred_region
    _
  $region33: #{surrogate_physics_forward.1} parent=0 // pred_fallthru
    _
  // Predicated region
  $region34: #{surrogate_physics_forward.1} parent=0 // pred_check
    _
  $region35: #{surrogate_physics_forward.1} parent=0 // pred_check_branch
    %240 = sbr.rel (0) target = $region37
  $region36: #{surrogate_physics_forward.1} parent=0 // pred_region
    _
  $region37: #{surrogate_physics_forward.1} parent=0 // pred_fallthru
    _

</llo_original>
